<compile_context>
chip_gen: v6e
topology: v6e:2x2x1
jax: 0.10.0
libtpu: 0.0.40
codegen_flags: <defaults>
</compile_context>

<pallas_src>
import functools
import math

import numpy as np
import jax
import jax.numpy as jnp
from jax.experimental import pallas as pl
from jax.experimental.pallas import tpu as pltpu

_LANE = 128            # TPU vreg lane width
_SUBLANE = 8           # TPU vreg sublane count (f32)
_TARGET_TILE_BYTES = 4 << 20   # ~4 MiB of output per grid step
_MAX_TILE_ROWS = 2048


def _round_up(x, m):
    return ((x + m - 1) // m) * m


def _cdiv(a, b):
    return -(-a // b)


def _row_plan(H, W, out_itemsize):
    """Choose (row_tile, n_row_blocks): ~4 MiB output tiles, 8-aligned,
    balanced, and >= 2 blocks when H allows (v7x two-core split)."""
    H = max(int(H), 1)
    row_bytes = max(int(W) * int(out_itemsize), 1)
    rows = min(_MAX_TILE_ROWS, max(_SUBLANE, _TARGET_TILE_BYTES // row_bytes))
    rows = max(_SUBLANE, (rows // _SUBLANE) * _SUBLANE)
    n_blocks = _cdiv(H, rows)
    if n_blocks < 2 and H > _SUBLANE:
        n_blocks = 2                      # let both v7x TensorCores work
    if n_blocks > 2 and n_blocks % 2 == 1:
        n_blocks += 1                     # prefer even counts for balance
    row_tile = _round_up(_cdiv(H, n_blocks), _SUBLANE)
    n_blocks = _cdiv(H, row_tile)
    return row_tile, n_blocks


# ----------------------------- Pallas kernel ------------------------------- #
def _interp_kernel(wy_ref, tmp_ref, out_ref):
    # wy_ref: (row_tile, gs)   tmp_ref: (gs, W) resident   out_ref: (row_tile, W)
    out_ref[...] = jnp.dot(wy_ref[...], tmp_ref[...],
                           preferred_element_type=jnp.float32).astype(out_ref.dtype)


@functools.partial(jax.jit,
                   static_argnames=("use_inverse", "row_tile", "n_blocks",
                                    "out_hw", "out_dtype"))
def _forward_pallas(scales, wy_pad, wxt, index, *,
                    use_inverse, row_tile, n_blocks, out_hw, out_dtype):
    """scales: [n_points, gs, gs]; wy_pad: [row_tile*n_blocks, gs]; wxt: [gs, W].

    Returns the (H, W) interpolated plane (written directly, no padded copy).
    """
    H, W = out_hw
    gs = scales.shape[-1]
    dtype = jnp.dtype(out_dtype)

    # Index-dependent but tiny work: select plane, exp, contract along x.
    # Done once per call in XLA; the Pallas grid only runs the big row matmul.
    s = jax.lax.dynamic_index_in_dim(scales, index, axis=0, keepdims=False)
    s = s.astype(jnp.float32)
    if use_inverse:
        s = jnp.exp(s)
    tmp = jnp.dot(s, wxt, preferred_element_type=jnp.float32)      # (gs, W)

    # Explicit scoped-VMEM limit: double-buffered output tile + wy blocks +
    # resident tmp, with headroom (keeps v5e's 16 MiB default happy and stays
    # far below v7x's 64 MiB total).
    tile_bytes = row_tile * W * dtype.itemsize
    need = 2 * tile_bytes + 2 * row_tile * gs * 4 + 2 * gs * W * 4 + (2 << 20)
    vmem_limit = int(min(max(need, 16 << 20), 64 << 20))

    out = pl.pallas_call(
        _interp_kernel,
        out_shape=jax.ShapeDtypeStruct((H, W), dtype),
        grid_spec=pl.GridSpec(
            grid=(n_blocks,),
            in_specs=[
                # per-row-block slice of the y-interpolation weights
                pl.BlockSpec((row_tile, gs), lambda i: (i, 0)),
                # precomputed exp(scale) @ wxT, resident across all blocks
                pl.BlockSpec((gs, W), lambda i: (0, 0)),
            ],
            out_specs=pl.BlockSpec((row_tile, W), lambda i: (i, 0)),
        ),
        compiler_params=pltpu.CompilerParams(
            dimension_semantics=("parallel",),
            vmem_limit_bytes=vmem_limit),
    )(wy_pad, tmp)
    return out


# --------------------- glue: interpolation weight setup -------------------- #
def _bilinear_weights_np(out_size, in_size):
    """Row-interpolation matrix W[out, in] for align_corners=True bilinear."""
    if in_size == 1:
        return np.ones((out_size, 1), np.float32)
    if out_size == 1:
        w = np.zeros((1, in_size), np.float32)
        w[0, 0] = 1.0          # PyTorch maps a single output to src coord 0
        return w
    coords = np.arange(out_size, dtype=np.float64) * (in_size - 1) / (out_size - 1)
    lo = np.clip(np.floor(coords).astype(np.int64), 0, in_size - 1)
    hi = np.minimum(lo + 1, in_size - 1)
    frac = (coords - lo).astype(np.float32)
    w = np.zeros((out_size, in_size), np.float32)
    w[np.arange(out_size), lo] += 1.0 - frac
    w[np.arange(out_size), hi] += frac
    return w


# ------------------------------ module wrapper ----------------------------- #
class DepthScaleShiftCollection:
    def __init__(self, n_points=10, use_inverse=False, grid_size=1, key=None,
                 output_dtype=jnp.float32):
        self.n_points = n_points
        self.grid_size = grid_size
        self.use_inverse = use_inverse
        self.output_shape = None
        # output_dtype: set to jnp.bfloat16 to halve HBM writeback bytes (the
        # dominant cost, esp. on v5e) if the consumer tolerates it; the kernel
        # still accumulates in f32.
        self.output_dtype = jnp.dtype(output_dtype)
        self._weight_cache = {}
        # PyTorch __init__: shift_n = 0.0, scale_n = ones([1,1,gs,gs]).
        self.shifts = jnp.zeros((n_points, 1), dtype=jnp.float32)
        scales = jnp.ones((n_points, grid_size, grid_size), dtype=jnp.float32)
        if key is not None:
            # deterministic perturbation so exp / interpolation are non-trivial
            scales = scales + 0.1 * jax.random.normal(key, scales.shape,
                                                      dtype=jnp.float32)
        self.scales = scales

    def set_outputshape(self, output_shape):
        self.output_shape = tuple(int(v) for v in output_shape)
        if self.grid_size != 1:
            self._interp_weights(self.output_shape)   # warm the cache

    def _interp_weights(self, out_hw):
        itemsize = self.output_dtype.itemsize
        cache_key = (out_hw, self.grid_size, itemsize)
        cached = self._weight_cache.get(cache_key)
        if cached is not None:
            return cached
        H, W = out_hw
        gs = self.grid_size
        row_tile, n_blocks = _row_plan(H, W, itemsize)
        Hp = row_tile * n_blocks
        wy = np.zeros((Hp, gs), np.float32)           # zero-pad past H
        wy[:H] = _bilinear_weights_np(H, gs)
        wxt = np.ascontiguousarray(_bilinear_weights_np(W, gs).T)   # (gs, W)
        cached = (jnp.asarray(wy), jnp.asarray(wxt), row_tile, n_blocks)
        self._weight_cache[cache_key] = cached
        return cached

    def forward(self, index):
        shift = self.shifts[index]                     # shape [1]
        if self.grid_size == 1:
            # No interpolation: one scalar exp — skip the Pallas launch.
            s = self.scales[index]
            if self.use_inverse:
                s = jnp.exp(s)
            return s.reshape(1, 1, 1, 1).astype(self.output_dtype), shift

        H, W = self.output_shape
        wy_pad, wxt, row_tile, n_blocks = self._interp_weights((H, W))
        plane = _forward_pallas(self.scales, wy_pad, wxt,
                                jnp.asarray(index, jnp.int32),
                                use_inverse=self.use_inverse,
                                row_tile=row_tile,
                                n_blocks=n_blocks,
                                out_hw=(H, W),
                                out_dtype=str(self.output_dtype))
        return plane.reshape(1, 1, H, W), shift        # NCHW, like PyTorch

    def set_scale(self, index, scale):
        if self.use_inverse:
            scale = math.log(scale)
        self.scales = self.scales.at[index].set(scale)

    def get_scale_data(self, index):
        return self.forward(index)[0]


# ------------------------------ numpy reference ---------------------------- #
def _reference(scales_np, shifts_np, index, use_inverse, grid_size, out_shape):
    s = np.array(scales_np[index], dtype=np.float64)
    if use_inverse:
        s = np.exp(s)
    if grid_size != 1:
        H, W = out_shape
        ys = (np.arange(H) * (grid_size - 1) / (H - 1)) if H > 1 else np.zeros(H)
        xs = (np.arange(W) * (grid_size - 1) / (W - 1)) if W > 1 else np.zeros(W)
        y0 = np.clip(np.floor(ys).astype(int), 0, grid_size - 1)
        y1 = np.minimum(y0 + 1, grid_size - 1)
        fy = ys - y0
        x0 = np.clip(np.floor(xs).astype(int), 0, grid_size - 1)
        x1 = np.minimum(x0 + 1, grid_size - 1)
        fx = xs - x0
        out = (s[np.ix_(y0, x0)] * (1 - fy)[:, None] * (1 - fx)[None, :]
               + s[np.ix_(y0, x1)] * (1 - fy)[:, None] * fx[None, :]
               + s[np.ix_(y1, x0)] * fy[:, None] * (1 - fx)[None, :]
               + s[np.ix_(y1, x1)] * fy[:, None] * fx[None, :])
        s = out
    return s.reshape(1, 1, *s.shape[-2:]), np.array(shifts_np[index])


# ---------------------------------- main ----------------------------------- #
if __name__ == "__main__":
    key = jax.random.PRNGKey(0)

    # Test 1: small, module-consistent shapes: 4 point sets, 4x4 grid, 16x16 out
    n_points, grid_size, out_hw = 4, 4, (16, 16)
    mod = DepthScaleShiftCollection(n_points=n_points, use_inverse=True,
                                    grid_size=grid_size, key=key)
    mod.set_outputshape(out_hw)
    index = 2
    scale, shift = mod.forward(index)
    jax.block_until_ready((scale, shift))
    ref_scale, ref_shift = _reference(np.asarray(mod.scales), np.asarray(mod.shifts),
                                      index, True, grid_size, out_hw)
    assert scale.shape == (1, 1, out_hw[0], out_hw[1])
    assert shift.shape == (1,)
    np.testing.assert_allclose(np.asarray(scale), ref_scale, rtol=1e-5, atol=1e-5)
    np.testing.assert_allclose(np.asarray(shift), ref_shift, rtol=1e-6, atol=1e-6)

    # Test 2: taller/wider output to exercise row tiling + masked tail stores
    mod2 = DepthScaleShiftCollection(n_points=3, use_inverse=True, grid_size=8,
                                     key=jax.random.PRNGKey(1))
    mod2.set_outputshape((320, 200))   # 2 balanced row tiles of 160, W=200 tail-masked
    s2, sh2 = mod2.forward(1)
    jax.block_until_ready((s2, sh2))
    ref_s2, ref_sh2 = _reference(np.asarray(mod2.scales), np.asarray(mod2.shifts),
                                 1, True, 8, (320, 200))
    assert s2.shape == (1, 1, 320, 200)
    np.testing.assert_allclose(np.asarray(s2), ref_s2, rtol=1e-5, atol=1e-5)
    np.testing.assert_allclose(np.asarray(sh2), ref_sh2, rtol=1e-6, atol=1e-6)

    # Test 3: grid_size == 1 path (no Pallas launch, plain JAX exp/reshape)
    mod1 = DepthScaleShiftCollection(n_points=2, use_inverse=False, grid_size=1,
                                     key=jax.random.PRNGKey(0))
    s1, sh1 = mod1.forward(1)
    jax.block_until_ready((s1, sh1))
    ref_s1, ref_sh1 = _reference(np.asarray(mod1.scales), np.asarray(mod1.shifts),
                                 1, False, 1, None)
    assert s1.shape == (1, 1, 1, 1)
    np.testing.assert_allclose(np.asarray(s1), ref_s1, rtol=1e-6, atol=1e-6)
    np.testing.assert_allclose(np.asarray(sh1), ref_sh1, rtol=1e-6, atol=1e-6)

    # Test 4: non-multiple-of-8 height (partial last row block, masked stores)
    mod3 = DepthScaleShiftCollection(n_points=2, use_inverse=True, grid_size=4,
                                     key=jax.random.PRNGKey(2))
    mod3.set_outputshape((37, 130))
    s3, _ = mod3.forward(0)
    jax.block_until_ready(s3)
    ref_s3, _ = _reference(np.asarray(mod3.scales), np.asarray(mod3.shifts),
                           0, True, 4, (37, 130))
    np.testing.assert_allclose(np.asarray(s3), ref_s3, rtol=1e-5, atol=1e-5)

    print("KERNEL_OK")
</pallas_src>

<mosaic_0001>
module attributes {stable_mosaic.version = 11 : i64} {
  func.func @_interp_kernel(%arg0: i32, %arg1: memref<8x4xf32, #tpu.memory_space<vmem>>, %arg2: memref<4x16xf32, #tpu.memory_space<vmem>>, %arg3: memref<8x16xf32, #tpu.memory_space<vmem>>) attributes {dimension_semantics = [#tpu.dimension_semantics<parallel>], iteration_bounds = array<i64: 2>, scalar_prefetch = 0 : i64, scratch_operands = 0 : i64, tpu.core_type = #tpu.core_type<tc>, window_params = [{transform_indices = @transform_0, window_bounds = array<i64: 8, 4>}, {pipeline_mode = #tpu.pipeline_mode<synchronous>, transform_indices = @transform_1, window_bounds = array<i64: 4, 16>}, {transform_indices = @transform_2, window_bounds = array<i64: 8, 16>}]} {
    %c0 = arith.constant 0 : index
    %c0_0 = arith.constant 0 : index
    %0 = vector.load %arg1[%c0, %c0_0] : memref<8x4xf32, #tpu.memory_space<vmem>>, vector<8x4xf32>
    %c0_1 = arith.constant 0 : index
    %c0_2 = arith.constant 0 : index
    %1 = vector.load %arg2[%c0_1, %c0_2] : memref<4x16xf32, #tpu.memory_space<vmem>>, vector<4x16xf32>
    %cst = arith.constant dense<0.000000e+00> : vector<8x16xf32>
    %2 = tpu.matmul %0, %1, %cst {dimension_numbers = #tpu.dot_dimension_numbers<[1], [0], [0], [1], [0, 0, 1, 1], [], []>} : vector<8x4xf32>, vector<4x16xf32>, vector<8x16xf32> -> vector<8x16xf32>
    %c0_3 = arith.constant 0 : index
    %c0_4 = arith.constant 0 : index
    %3 = vector.load %arg3[%c0_3, %c0_4] : memref<8x16xf32, #tpu.memory_space<vmem>>, vector<8x16xf32>
    tpu.vector_store %arg3[%c0_3, %c0_4], %2 {strides = array<i32>} : memref<8x16xf32, #tpu.memory_space<vmem>>, vector<8x16xf32>,
    return
  }
  func.func @transform_0(%arg0: i32) -> (i32, i32) {
    %c0_i32 = arith.constant 0 : i32
    %c0_i32_0 = arith.constant 0 : i32
    return %arg0, %c0_i32 : i32, i32
  }
  func.func @transform_1(%arg0: i32) -> (i32, i32) {
    %c0_i32 = arith.constant 0 : i32
    %c0_i32_0 = arith.constant 0 : i32
    %c0_i32_1 = arith.constant 0 : i32
    return %c0_i32, %c0_i32_0 : i32, i32
  }
  func.func @transform_2(%arg0: i32) -> (i32, i32) {
    %c0_i32 = arith.constant 0 : i32
    %c0_i32_0 = arith.constant 0 : i32
    return %arg0, %c0_i32 : i32, i32
  }
}

</mosaic_0001>

<llo_original>
// kernel: _forward_pallas.1
$region0: #{_forward_pallas.1}
  #allocation0 [shape = 'u32[]', space=smem, size = 0x4, offset = 0x4, fixed_abs, tag = 'smem constant byte address 0x4 - core index']
  #allocation1 [shape = 'u32[144,128]{1,0:T(1,128)}', space=vmem, size = 0x12000, scoped, tag = 'internal scratch']
  %s0 = inlined_call_operand.vmem [shape: f32[16,4], index: 0, kind: input, shape index: {}]
  %s1 = inlined_call_operand.vmem [shape: f32[4,16], index: 1, kind: input, shape index: {}]
  %s2 = inlined_call_operand.hbm [shape: f32[16,16], index: 2, kind: output, shape index: {}]
  %s3 = sld [smem:[#allocation0]]
  $region41: #{_forward_pallas.1} parent=0
    _
  %s5 = ssub.s32 1, %s3
  %s6 = scalar_select 0, %s5, %s3
  $region1: #{_forward_pallas.1} parent=0
    #allocation2 [shape = 'u8[8192]{0}', space=vmem, size = 0x2000, scoped, tag = 'output window, operand 0']
    #allocation3 [shape = 's32[2]{0}', space=sflag, size = 0x8, scoped, tag = 'scoped memory for _forward_pallas.1']
    %7 = vsyncpa [#allocation3], 0
    %s8 = scalar_lea.sflag [#allocation3], 1
    %9 = vsyncpa %s8, 0
    loop: start=0, step=1, limit=4
    $region2: #{_forward_pallas.1} parent=1 // loop_pre_header
      _
    $region3: #{_forward_pallas.1} parent=1 // loop_header
      %s11 = sphi 0, %s15
      %p12 = scmp.ge.s32.totalorder %s11, 4
      %s21 = sphi 0, %s23
      %s24 = sphi 0, %s21
      %s25 = sphi 0, %s24
      %s41 = sphi 0, %s25
      %s45 = sphi 0, %s45
      %s47 = sphi 0, %s45
      %s48 = sphi 0, %s47
      %s62 = sphi 0, %s48
      %s68 = sphi 0, %s70
      %s71 = sphi 0, %s68
      %s72 = sphi 0, %s71
      %s88 = sphi 0, %s72
    $region4: #{_forward_pallas.1} parent=1 // loop_header_branch
      %14 = sbr.rel (%p12) target = $region8
    $region5: #{_forward_pallas.1} parent=1 // loop_body
      %s16 = ssub.s32 %s11, 1
      %s17 = ssub.s32 %s11, 2
      %s18 = sadd.s32 %s11, 1
      %s19 = ssub.s32 %s11, %s18
      %p20 = scmp.eq.s32.totalorder %s19, 0
      %s22 = sadd.s32 %s21, 1
      %s23 = scalar_select %p20, %s21, %s22
      %p26 = pneg %p20
      %p27 = scmp.eq.s32.totalorder %s11, 1
      %p28 = por %p26, %p27
      %p29 = scmp.ne.s32.totalorder %s21, %s24
      %p30 = scmp.eq.s32.totalorder %s11, 0
      %p31 = por %p29, %p30
      %p32 = scmp.ne.s32.totalorder %s21, %s24
      %p33 = scmp.eq.s32.totalorder %s16, 1
      %p34 = por %p32, %p33
      %p35 = scmp.ne.s32.totalorder %s24, %s25
      %p36 = scmp.eq.s32.totalorder %s16, 0
      %p37 = por %p35, %p36
      %p38 = scmp.ne.s32.totalorder %s24, %s25
      %p39 = scmp.eq.s32.totalorder %s17, 1
      %p40 = por %p38, %p39
      %p42 = scmp.ne.s32.totalorder %s25, %s41
      %p43 = scmp.eq.s32.totalorder %s17, 0
      %p44 = por %p42, %p43
      %s46 = sadd.s32 %s45, 1
      %p49 = scmp.eq.s32.totalorder %s11, 1
      %p50 = scmp.ne.s32.totalorder %s45, %s47
      %p51 = scmp.eq.s32.totalorder %s11, 0
      %p52 = por %p50, %p51
      %p53 = scmp.ne.s32.totalorder %s45, %s47
      %p54 = scmp.eq.s32.totalorder %s16, 1
      %p55 = por %p53, %p54
      %p56 = scmp.ne.s32.totalorder %s47, %s48
      %p57 = scmp.eq.s32.totalorder %s16, 0
      %p58 = por %p56, %p57
      %p59 = scmp.ne.s32.totalorder %s47, %s48
      %p60 = scmp.eq.s32.totalorder %s17, 1
      %p61 = por %p59, %p60
      %p63 = scmp.ne.s32.totalorder %s48, %s62
      %p64 = scmp.eq.s32.totalorder %s17, 0
      %p65 = por %p63, %p64
      %s66 = ssub.s32 %s11, %s18
      %p67 = scmp.eq.s32.totalorder %s66, 0
      %s69 = sadd.s32 %s68, 1
      %s70 = scalar_select %p67, %s68, %s69
      %p73 = pneg %p67
      %p74 = scmp.eq.s32.totalorder %s11, 1
      %p75 = por %p73, %p74
      %p76 = scmp.ne.s32.totalorder %s68, %s71
      %p77 = scmp.eq.s32.totalorder %s11, 0
      %p78 = por %p76, %p77
      %p79 = scmp.ne.s32.totalorder %s68, %s71
      %p80 = scmp.eq.s32.totalorder %s16, 1
      %p81 = por %p79, %p80
      %p82 = scmp.ne.s32.totalorder %s71, %s72
      %p83 = scmp.eq.s32.totalorder %s16, 0
      %p84 = por %p82, %p83
      %p85 = scmp.ne.s32.totalorder %s71, %s72
      %p86 = scmp.eq.s32.totalorder %s17, 1
      %p87 = por %p85, %p86
      %p89 = scmp.ne.s32.totalorder %s72, %s88
      %p90 = scmp.eq.s32.totalorder %s17, 0
      %p91 = por %p89, %p90
      %p92 = scmp.le.s32.totalorder 1, %s11
      %p93 = scmp.lt.s32.totalorder %s11, 3
      %p94 = pnand %p92, %p93
      %p95 = pneg %p94
      // Predicated region
      $region9: #{_forward_pallas.1} parent=5 // pred_check
        _
      $region10: #{_forward_pallas.1} parent=5 // pred_check_branch
        %97 = sbr.rel (%p94) target = $region12
      $region11: #{_forward_pallas.1} parent=5 // pred_region
        %s98 = ssub.s32 %s11, 1
        // Predicated region
        $region13: #{_forward_pallas.1} parent=11 // pred_check
          %p99 = pneg %p58
        $region14: #{_forward_pallas.1} parent=11 // pred_check_branch
          %101 = sbr.rel (%p99) target = $region16
        $region15: #{_forward_pallas.1} parent=11 // pred_region
          _
        $region16: #{_forward_pallas.1} parent=11 // pred_fallthru
          _
      $region12: #{_forward_pallas.1} parent=5 // pred_fallthru
        _
      %p102 = scmp.lt.s32.totalorder %s11, 2
      // Predicated region
      $region17: #{_forward_pallas.1} parent=5 // pred_check
        %p103 = pneg %p102
      $region18: #{_forward_pallas.1} parent=5 // pred_check_branch
        %105 = sbr.rel (%p103) target = $region20
      $region19: #{_forward_pallas.1} parent=5 // pred_region
        // Predicated region
        $region21: #{_forward_pallas.1} parent=19 // pred_check
          %p106 = pneg %p31
        $region22: #{_forward_pallas.1} parent=19 // pred_check_branch
          %108 = sbr.rel (%p106) target = $region24
        $region23: #{_forward_pallas.1} parent=19 // pred_region
          %p109 = scmp.lt.s32.totalorder %s11, 1
          %s110 = scalar_select %p109, %s11, 1
          %s111 = smul.addr %s110, 8
          %s112 = scalar_lea.vmem %s0, %s111
        $region24: #{_forward_pallas.1} parent=19 // pred_fallthru
          _
      $region20: #{_forward_pallas.1} parent=5 // pred_fallthru
        _
      %p113 = scmp.le.s32.totalorder 1, %s11
      %p114 = scmp.lt.s32.totalorder %s11, 3
      %p115 = pnand %p113, %p114
      %p116 = pneg %p115
      // Predicated region
      $region25: #{_forward_pallas.1} parent=5 // pred_check
        _
      $region26: #{_forward_pallas.1} parent=5 // pred_check_branch
        %118 = sbr.rel (%p115) target = $region28
      $region27: #{_forward_pallas.1} parent=5 // pred_region
        %s119 = ssub.s32 %s11, 1
        %p120 = scmp.lt.s32.totalorder %s16, 1
        %s121 = scalar_select %p120, %s16, 1
        %s122 = smul.addr %s121, 8
        %s123 = scalar_lea.vmem %s0, %s122
        %p124 = pneg %p37
        %p125 = pneg %p34
        %p126 = pneg %p58
        %p127 = pneg %p55
        %p128 = pneg %p84
        %p129 = pneg %p81
        %s130 = sand.u32 %s71, 1
        %s131 = scalar_lea.sflag [#allocation3], %s130
        %s132 = sand.u32 %s71, 1
        %s133 = smul.addr %s132, 8
        %s134 = scalar_lea.vmem [#allocation2], %s133
        %p135 = scmp.lt.s32.totalorder %s16, 1
        %s136 = scalar_select %p135, %s16, 1
        %s137 = smul.addr %s136, 8
        %s138 = scalar_lea.vmem %s0, %s137
        %v139 = vld [vmem:[%s138] sm:$0xff]
        %v140 = vld [vmem:[%s1] sm:$0xf]
        %vm141 = vcmask 31744
        %v143 = vsel %vm141, %v139, 0
        %vm145 = vcmask 1043456
        %v147 = vsel %vm145, %v140, 0
        %149 = vmatprep.subr.mxu0 0.0
        %150 = vmatpush1.msra.mxu0 0.0
        %151 = vmatprep.subr.mxu0 0.0
        %152 = vmatpush1.msra.mxu0 0.0
        %153 = vmatprep.subr.mxu0 0.0
        %154 = vmatpush1.msra.mxu0 0.0
        %155 = vmatprep.subr.mxu0 0.0
        %156 = vmatpush1.msra.mxu0 0.0
        %157 = vmatprep.subr.mxu0 0.0
        %158 = vmatpush1.msra.mxu0 0.0
        %159 = vmatprep.subr.mxu0 0.0
        %160 = vmatpush1.msra.mxu0 0.0
        %161 = vmatprep.subr.mxu0 0.0
        %162 = vmatpush1.msra.mxu0 0.0
        %163 = vmatprep.subr.mxu0 0.0
        %164 = vmatpush1.msra.mxu0 0.0
        %165 = vmatprep.subr.mxu0 0.0
        %166 = vmatpush1.msra.mxu0 0.0
        %167 = vmatprep.subr.mxu0 0.0
        %168 = vmatpush1.msra.mxu0 0.0
        %169 = vmatprep.subr.mxu0 0.0
        %170 = vmatpush1.msra.mxu0 0.0
        %171 = vmatprep.subr.mxu0 0.0
        %172 = vmatpush1.msra.mxu0 0.0
        %173 = vmatprep.subr.mxu0 0.0
        %174 = vmatpush1.msra.mxu0 0.0
        %175 = vmatprep.subr.mxu0 0.0
        %176 = vmatpush1.msra.mxu0 0.0
        %177 = vmatprep.subr.mxu0 0.0
        %178 = vmatpush1.msra.mxu0 0.0
        %179 = vmatprep.subr.mxu0 0.0
        %180 = vmatpush1.msra.mxu0 %v147
        %181 = vmatprep.subr.mxu0 0.0
        %182 = vmatpush2.msra.mxu0 0.0
        %183 = vmatprep.subr.mxu0 0.0
        %184 = vmatpush2.msra.mxu0 0.0
        %185 = vmatprep.subr.mxu0 0.0
        %186 = vmatpush2.msra.mxu0 0.0
        %187 = vmatprep.subr.mxu0 0.0
        %188 = vmatpush2.msra.mxu0 0.0
        %189 = vmatprep.subr.mxu0 0.0
        %190 = vmatpush2.msra.mxu0 0.0
        %191 = vmatprep.subr.mxu0 0.0
        %192 = vmatpush2.msra.mxu0 0.0
        %193 = vmatprep.subr.mxu0 0.0
        %194 = vmatpush2.msra.mxu0 0.0
        %195 = vmatprep.subr.mxu0 0.0
        %196 = vmatpush2.msra.mxu0 0.0
        %197 = vmatprep.subr.mxu0 0.0
        %198 = vmatpush2.msra.mxu0 0.0
        %199 = vmatprep.subr.mxu0 0.0
        %200 = vmatpush2.msra.mxu0 0.0
        %201 = vmatprep.subr.mxu0 0.0
        %202 = vmatpush2.msra.mxu0 0.0
        %203 = vmatprep.subr.mxu0 0.0
        %204 = vmatpush2.msra.mxu0 0.0
        %205 = vmatprep.subr.mxu0 0.0
        %206 = vmatpush2.msra.mxu0 0.0
        %207 = vmatprep.subr.mxu0 0.0
        %208 = vmatpush2.msra.mxu0 0.0
        %209 = vmatprep.subr.mxu0 0.0
        %210 = vmatpush2.msra.mxu0 0.0
        %211 = vmatprep.subr.mxu0 0.0
        %212 = vmatpush2.msra.mxu0 0.0
        %213 = vmatprep.mubr.f32.mxu0 0.0
        %214 = vmatmul.mubr.f32.gmra.mxu0 %v143
        %v215 = vpop.f32.mrf.mxu0
        %v216 = vadd.f32 0.0, %v215
        %v217 = vpop.f32.mrf.mxu0
        %218 = vdwg.mxu0
        %vm219 = vcmask 130048
        %220 = vst.msk [vmem:[%s134] sm:$0xff] %vm219, %v216
        %s221 = sand.u32 %s71, 1
        %s222 = scalar_lea.sflag [#allocation3], %s221
        %s223 = sand.u32 %s71, 1
        %s224 = smul.addr %s223, 8
        %s225 = scalar_lea.vmem [#allocation2], %s224
        // Predicated region
        $region29: #{_forward_pallas.1} parent=27 // pred_check
          %p226 = pneg %p81
        $region30: #{_forward_pallas.1} parent=27 // pred_check_branch
          %228 = sbr.rel (%p226) target = $region32
        $region31: #{_forward_pallas.1} parent=27 // pred_region
          %s230 = ssub.s32 128, 128
          %231 = vsyncadd %s222, %s230
          %s232 = smul.addr %s16, 128
          %s233 = scalar_lea.hbm %s2, %s232
          %s235 = sshll.u32 %s225, 4
          %s236 = int_to_ptr.vmem [resolvable:$true] %s235
          %238 = dma.vmem_to_hbm [thread:$0]  %s236, 128, %s233, %s222
        $region32: #{_forward_pallas.1} parent=27 // pred_fallthru
          _
      $region28: #{_forward_pallas.1} parent=5 // pred_fallthru
        _
      %p239 = scmp.le.s32.totalorder 2, %s11
      // Predicated region
      $region33: #{_forward_pallas.1} parent=5 // pred_check
        %p240 = pneg %p239
      $region34: #{_forward_pallas.1} parent=5 // pred_check_branch
        %242 = sbr.rel (%p240) target = $region36
      $region35: #{_forward_pallas.1} parent=5 // pred_region
        %s243 = ssub.s32 %s11, 2
        // Predicated region
        $region37: #{_forward_pallas.1} parent=35 // pred_check
          %p244 = pneg %p87
        $region38: #{_forward_pallas.1} parent=35 // pred_check_branch
          %246 = sbr.rel (%p244) target = $region40
        $region39: #{_forward_pallas.1} parent=35 // pred_region
          %s247 = sand.u32 %s72, 1
          %s248 = scalar_lea.sflag [#allocation3], %s247
          %s249 = sand.u32 %s72, 1
          %s250 = smul.addr %s249, 8
          %s251 = scalar_lea.vmem [#allocation2], %s250
          %252 = dma.done %s248, 128
        $region40: #{_forward_pallas.1} parent=35 // pred_fallthru
          _
      $region36: #{_forward_pallas.1} parent=5 // pred_fallthru
        _
    $region6: #{_forward_pallas.1} parent=1 // loop_footer
      %s15 = sadd.s32 1, %s11
    $region7: #{_forward_pallas.1} parent=1 // loop_footer_branch
      %10 = sbr.rel target = $region3
    $region8: #{_forward_pallas.1} parent=1 // loop_exit
      _
    %253 = vsyncpa [#allocation3], 1
    %s254 = scalar_lea.sflag [#allocation3], 1
    %255 = vsyncpa %s254, 1

</llo_original>
